<compile_context>
chip_gen: v7x
topology: tpu7x:2x2x1
jax: 0.10.0
libtpu: 0.0.40
codegen_flags: <defaults>
</compile_context>

<pallas_src>
import functools

import jax
import jax.numpy as jnp
from jax.experimental import pallas as pl
from jax.experimental.pallas import tpu as pltpu


HEAD_PAD = 128  # lane-dense padded width for the fused src/cls head output


def _leaky_relu(x, slope=0.02):
    # maximum(x, slope*x) == LeakyReLU(slope) for 0 < slope < 1; cheaper than
    # where(x > 0, x, slope*x) on the VPU (mul+max vs cmp+mul+select).
    return jnp.maximum(x, slope * x)


def _discriminator_kernel(
    x_ref,                  # [TB, 256]        f32 (cast to bf16 in-kernel)
    w1_ref, b1_ref,         # [256, H] bf16, [1, H] f32 (bf16 if bf16_act)
    w2_ref, b2_ref,         # [H, H]   bf16, [1, H] f32 (bf16 if bf16_act)
    whead_ref, bhead_ref,   # [H, 128] bf16, [1, 128] f32 (src|cls|zero-pad)
    out_ref,                # [TB, 128]        f32
    *, bf16_act: bool,
):
    x = x_ref[...].astype(jnp.bfloat16)

    # main[0]: Linear(256 -> dim_h) + LeakyReLU(0.02)
    h = jnp.dot(x, w1_ref[...], preferred_element_type=jnp.float32)
    if bf16_act:
        h = _leaky_relu(h.astype(jnp.bfloat16) + b1_ref[...])
    else:
        h = _leaky_relu(h + b1_ref[...]).astype(jnp.bfloat16)

    # main[2]: Linear(dim_h -> dim_h) + LeakyReLU(0.02)   (n_h = 1)
    h = jnp.dot(h, w2_ref[...], preferred_element_type=jnp.float32)
    if bf16_act:
        h = _leaky_relu(h.astype(jnp.bfloat16) + b2_ref[...])
    else:
        h = _leaky_relu(h + b2_ref[...]).astype(jnp.bfloat16)

    # Fused src+cls head: Linear(dim_h -> 3), zero-padded to 128 lanes (f32).
    out = jnp.dot(h, whead_ref[...],
                  preferred_element_type=jnp.float32) + bhead_ref[...]
    out_ref[...] = out.astype(out_ref.dtype)


def _prepare_params(params, bf16_act):
    """Cast weights to bf16 and build the fused/padded head once."""
    dim_h = params["w1"].shape[1]
    bias_dtype = jnp.bfloat16 if bf16_act else jnp.float32
    # Fused head weight [dim_h, 3] -> zero-padded to [dim_h, 128].
    whead = jnp.concatenate([params["wsrc"], params["wcls"]], axis=1)
    whead = jnp.pad(whead, ((0, 0), (0, HEAD_PAD - whead.shape[1])))
    bhead = jnp.concatenate([params["bsrc"], params["bcls"]], axis=1)
    bhead = jnp.pad(bhead, ((0, 0), (0, HEAD_PAD - bhead.shape[1])))
    return {
        "w1": params["w1"].astype(jnp.bfloat16),
        "b1": params["b1"].astype(bias_dtype),
        "w2": params["w2"].astype(jnp.bfloat16),
        "b2": params["b2"].astype(bias_dtype),
        "whead": whead.astype(jnp.bfloat16),
        "bhead": bhead.astype(jnp.float32),
        "dim_h": dim_h,
    }


def _vmem_limit_bytes(tb, in_dim, dim_h, bf16_act):
    """Right-sized VMEM cap: actual static footprint + headroom, well under the
    64 MiB physical per-TC VMEM of v7x."""
    bpe_bias = 2 if bf16_act else 4
    weights = (in_dim * dim_h + dim_h * dim_h + dim_h * HEAD_PAD) * 2  # bf16
    biases = 2 * dim_h * bpe_bias + HEAD_PAD * 4
    x_tile = tb * in_dim * 4          # f32 input tile
    out_tile = tb * HEAD_PAD * 4      # f32 output tile
    # BlockSpec double-buffers every operand (incl. constant-index weights).
    need = 2 * (weights + biases + x_tile + out_tile)
    limit = need + (8 << 20)                      # headroom for internal scratch
    return int(min(max(limit, 16 << 20), 32 << 20))


@functools.partial(jax.jit, static_argnames=("tb", "bf16_act"))
def discriminator_forward(x, params, *, tb=512, bf16_act=False):
    """x: [B, 256] float32. Returns (out_src [B, 1], out_cls [B, 2])."""
    B, in_dim = x.shape
    p = _prepare_params(params, bf16_act)
    dim_h = p["dim_h"]

    # Batch tile: TB=512 for real batches (amortizes per-step overhead, fills
    # the MXU, multiple of 128 for v5e); small batches round up to a
    # 16-multiple and run a single grid step instead of padding to 512.
    if B < tb:
        tb = max(16, ((B + 15) // 16) * 16)
    b_pad = pl.cdiv(B, tb) * tb
    x_in = x
    if b_pad != B:
        x_in = jnp.pad(x_in, ((0, b_pad - B), (0, 0)))

    grid = (b_pad // tb,)
    const = lambda i: (0, 0)  # weights: same block every step -> stay resident

    out = pl.pallas_call(
        functools.partial(_discriminator_kernel, bf16_act=bf16_act),
        out_shape=jax.ShapeDtypeStruct((b_pad, HEAD_PAD), jnp.float32),
        grid=grid,
        in_specs=[
            pl.BlockSpec((tb, in_dim), lambda i: (i, 0)),      # x (f32)
            pl.BlockSpec((in_dim, dim_h), const),              # w1
            pl.BlockSpec((1, dim_h), const),                   # b1
            pl.BlockSpec((dim_h, dim_h), const),               # w2
            pl.BlockSpec((1, dim_h), const),                   # b2
            pl.BlockSpec((dim_h, HEAD_PAD), const),            # fused head w
            pl.BlockSpec((1, HEAD_PAD), const),                # fused head b
        ],
        out_specs=pl.BlockSpec((tb, HEAD_PAD), lambda i: (i, 0)),
        compiler_params=pltpu.CompilerParams(
            dimension_semantics=("parallel",),
            vmem_limit_bytes=_vmem_limit_bytes(tb, in_dim, dim_h, bf16_act),
        ),
    )(
        x_in,
        p["w1"], p["b1"],
        p["w2"], p["b2"],
        p["whead"], p["bhead"],
    )

    # Single slice of the padded slab, then split src/cls from it.
    out3 = out[:B, :3]
    out_src = out3[:, 0:1]
    out_cls = out3[:, 1:3]
    return out_src, out_cls


def init_params(key, dim_h=256, in_dim=256):
    """Deterministic parameter init mimicking PyTorch Linear default
    (uniform +/- 1/sqrt(fan_in)). Weights stored as [in, out]."""
    def linear(k, fan_in, fan_out):
        kw, kb = jax.random.split(k)
        bound = 1.0 / jnp.sqrt(jnp.float32(fan_in))
        w = jax.random.uniform(kw, (fan_in, fan_out), jnp.float32, -bound, bound)
        b = jax.random.uniform(kb, (1, fan_out), jnp.float32, -bound, bound)
        return w, b

    k1, k2, k3, k4 = jax.random.split(key, 4)
    w1, b1 = linear(k1, in_dim, dim_h)
    w2, b2 = linear(k2, dim_h, dim_h)
    wsrc, bsrc = linear(k3, dim_h, 1)
    wcls, bcls = linear(k4, dim_h, 2)
    return {
        "w1": w1, "b1": b1,
        "w2": w2, "b2": b2,
        "wsrc": wsrc, "bsrc": bsrc,
        "wcls": wcls, "bcls": bcls,
    }


def _reference_forward(x, params):
    """Pure-JAX reference using the same bf16-input / f32-accumulate math."""
    xb = x.astype(jnp.bfloat16)
    w1 = params["w1"].astype(jnp.bfloat16)
    w2 = params["w2"].astype(jnp.bfloat16)
    wsrc = params["wsrc"].astype(jnp.bfloat16)
    wcls = params["wcls"].astype(jnp.bfloat16)

    h = jnp.dot(xb, w1, preferred_element_type=jnp.float32) + params["b1"]
    h = jnp.where(h > 0, h, 0.02 * h)
    h = jnp.dot(h.astype(jnp.bfloat16), w2,
                preferred_element_type=jnp.float32) + params["b2"]
    h = jnp.where(h > 0, h, 0.02 * h)
    hb = h.astype(jnp.bfloat16)
    src = jnp.dot(hb, wsrc, preferred_element_type=jnp.float32) + params["bsrc"]
    cls = jnp.dot(hb, wcls, preferred_element_type=jnp.float32) + params["bcls"]
    return src, cls


if __name__ == "__main__":
    key = jax.random.PRNGKey(0)
    kx, kx2, kp = jax.random.split(key, 3)

    IN_DIM = 256   # fixed by the module (nn.Linear(256, dim_h))
    DIM_H = 256    # small dim_h for the self-test (module default is 1024)
    params = init_params(kp, dim_h=DIM_H, in_dim=IN_DIM)

    # Test 1: small batch (single grid step, batch padded inside the kernel).
    B = 8
    x = jax.random.normal(kx, (B, IN_DIM), dtype=jnp.float32)
    out_src, out_cls = discriminator_forward(x, params)
    out_src = jax.block_until_ready(out_src)
    out_cls = jax.block_until_ready(out_cls)

    ref_src, ref_cls = _reference_forward(x, params)
    assert out_src.shape == (B, 1) and out_cls.shape == (B, 2)
    assert jnp.allclose(out_src, ref_src, atol=1e-2, rtol=1e-2)
    assert jnp.allclose(out_cls, ref_cls, atol=1e-2, rtol=1e-2)

    # Test 2: multi-tile grid (3 grid steps) with a small explicit tile.
    B2 = 48
    x2 = jax.random.normal(kx2, (B2, IN_DIM), dtype=jnp.float32)
    out_src2, out_cls2 = discriminator_forward(x2, params, tb=16)
    out_src2 = jax.block_until_ready(out_src2)
    out_cls2 = jax.block_until_ready(out_cls2)

    ref_src2, ref_cls2 = _reference_forward(x2, params)
    assert out_src2.shape == (B2, 1) and out_cls2.shape == (B2, 2)
    assert jnp.allclose(out_src2, ref_src2, atol=1e-2, rtol=1e-2)
    assert jnp.allclose(out_cls2, ref_cls2, atol=1e-2, rtol=1e-2)

    print("KERNEL_OK")
</pallas_src>

<mosaic_0001>
module attributes {stable_mosaic.version = 11 : i64} {
  func.func @_discriminator_kernel(%arg0: i32, %arg1: memref<16x256xf32, #tpu.memory_space<vmem>>, %arg2: memref<256x256xbf16, #tpu.memory_space<vmem>>, %arg3: memref<1x256xf32, #tpu.memory_space<vmem>>, %arg4: memref<256x256xbf16, #tpu.memory_space<vmem>>, %arg5: memref<1x256xf32, #tpu.memory_space<vmem>>, %arg6: memref<256x128xbf16, #tpu.memory_space<vmem>>, %arg7: memref<1x128xf32, #tpu.memory_space<vmem>>, %arg8: memref<16x128xf32, #tpu.memory_space<vmem>>) attributes {dimension_semantics = [#tpu.dimension_semantics<parallel>], iteration_bounds = array<i64: 1>, scalar_prefetch = 0 : i64, scratch_operands = 0 : i64, tpu.core_type = #tpu.core_type<tc>, window_params = [{transform_indices = @transform_0, window_bounds = array<i64: 16, 256>}, {pipeline_mode = #tpu.pipeline_mode<synchronous>, transform_indices = @transform_1, window_bounds = array<i64: 256, 256>}, {pipeline_mode = #tpu.pipeline_mode<synchronous>, transform_indices = @transform_2, window_bounds = array<i64: 1, 256>}, {pipeline_mode = #tpu.pipeline_mode<synchronous>, transform_indices = @transform_3, window_bounds = array<i64: 256, 256>}, {pipeline_mode = #tpu.pipeline_mode<synchronous>, transform_indices = @transform_4, window_bounds = array<i64: 1, 256>}, {pipeline_mode = #tpu.pipeline_mode<synchronous>, transform_indices = @transform_5, window_bounds = array<i64: 256, 128>}, {pipeline_mode = #tpu.pipeline_mode<synchronous>, transform_indices = @transform_6, window_bounds = array<i64: 1, 128>}, {transform_indices = @transform_7, window_bounds = array<i64: 16, 128>}]} {
    %c0 = arith.constant 0 : index
    %c0_0 = arith.constant 0 : index
    %0 = vector.load %arg1[%c0, %c0_0] : memref<16x256xf32, #tpu.memory_space<vmem>>, vector<16x256xf32>
    %1 = arith.truncf %0 : vector<16x256xf32> to vector<16x256xbf16>
    %c0_1 = arith.constant 0 : index
    %c0_2 = arith.constant 0 : index
    %2 = vector.load %arg2[%c0_1, %c0_2] : memref<256x256xbf16, #tpu.memory_space<vmem>>, vector<256x256xbf16>
    %cst = arith.constant dense<0.000000e+00> : vector<16x256xf32>
    %3 = tpu.matmul %1, %2, %cst {dimension_numbers = #tpu.dot_dimension_numbers<[1], [0], [0], [1], [0, 0, 1, 1], [], []>} : vector<16x256xbf16>, vector<256x256xbf16>, vector<16x256xf32> -> vector<16x256xf32>
    %c0_3 = arith.constant 0 : index
    %c0_4 = arith.constant 0 : index
    %4 = vector.load %arg3[%c0_3, %c0_4] : memref<1x256xf32, #tpu.memory_space<vmem>>, vector<1x256xf32>
    %5 = vector.broadcast %4 : vector<1x256xf32> to vector<16x256xf32>
    %6 = arith.addf %3, %5 : vector<16x256xf32>
    %cst_5 = arith.constant 2.000000e-02 : f32
    %7 = vector.broadcast %cst_5 : f32 to vector<16x256xf32>
    %8 = arith.mulf %7, %6 : vector<16x256xf32>
    %9 = arith.maximumf %6, %8 : vector<16x256xf32>
    %10 = arith.truncf %9 : vector<16x256xf32> to vector<16x256xbf16>
    %c0_6 = arith.constant 0 : index
    %c0_7 = arith.constant 0 : index
    %11 = vector.load %arg4[%c0_6, %c0_7] : memref<256x256xbf16, #tpu.memory_space<vmem>>, vector<256x256xbf16>
    %cst_8 = arith.constant dense<0.000000e+00> : vector<16x256xf32>
    %12 = tpu.matmul %10, %11, %cst_8 {dimension_numbers = #tpu.dot_dimension_numbers<[1], [0], [0], [1], [0, 0, 1, 1], [], []>} : vector<16x256xbf16>, vector<256x256xbf16>, vector<16x256xf32> -> vector<16x256xf32>
    %c0_9 = arith.constant 0 : index
    %c0_10 = arith.constant 0 : index
    %13 = vector.load %arg5[%c0_9, %c0_10] : memref<1x256xf32, #tpu.memory_space<vmem>>, vector<1x256xf32>
    %14 = vector.broadcast %13 : vector<1x256xf32> to vector<16x256xf32>
    %15 = arith.addf %12, %14 : vector<16x256xf32>
    %cst_11 = arith.constant 2.000000e-02 : f32
    %16 = vector.broadcast %cst_11 : f32 to vector<16x256xf32>
    %17 = arith.mulf %16, %15 : vector<16x256xf32>
    %18 = arith.maximumf %15, %17 : vector<16x256xf32>
    %19 = arith.truncf %18 : vector<16x256xf32> to vector<16x256xbf16>
    %c0_12 = arith.constant 0 : index
    %c0_13 = arith.constant 0 : index
    %20 = vector.load %arg6[%c0_12, %c0_13] : memref<256x128xbf16, #tpu.memory_space<vmem>>, vector<256x128xbf16>
    %cst_14 = arith.constant dense<0.000000e+00> : vector<16x128xf32>
    %21 = tpu.matmul %19, %20, %cst_14 {dimension_numbers = #tpu.dot_dimension_numbers<[1], [0], [0], [1], [0, 0, 1, 1], [], []>} : vector<16x256xbf16>, vector<256x128xbf16>, vector<16x128xf32> -> vector<16x128xf32>
    %c0_15 = arith.constant 0 : index
    %c0_16 = arith.constant 0 : index
    %22 = vector.load %arg7[%c0_15, %c0_16] : memref<1x128xf32, #tpu.memory_space<vmem>>, vector<1x128xf32>
    %23 = vector.broadcast %22 : vector<1x128xf32> to vector<16x128xf32>
    %24 = arith.addf %21, %23 : vector<16x128xf32>
    %c0_17 = arith.constant 0 : index
    %c0_18 = arith.constant 0 : index
    %25 = vector.load %arg8[%c0_17, %c0_18] : memref<16x128xf32, #tpu.memory_space<vmem>>, vector<16x128xf32>
    tpu.vector_store %arg8[%c0_17, %c0_18], %24 {strides = array<i32>} : memref<16x128xf32, #tpu.memory_space<vmem>>, vector<16x128xf32>,
    return
  }
  func.func @transform_0(%arg0: i32) -> (i32, i32) {
    %c0_i32 = arith.constant 0 : i32
    %c0_i32_0 = arith.constant 0 : i32
    return %arg0, %c0_i32 : i32, i32
  }
  func.func @transform_1(%arg0: i32) -> (i32, i32) {
    %c0_i32 = arith.constant 0 : i32
    %c0_i32_0 = arith.constant 0 : i32
    %c0_i32_1 = arith.constant 0 : i32
    return %c0_i32, %c0_i32_0 : i32, i32
  }
  func.func @transform_2(%arg0: i32) -> (i32, i32) {
    %c0_i32 = arith.constant 0 : i32
    %c0_i32_0 = arith.constant 0 : i32
    %c0_i32_1 = arith.constant 0 : i32
    return %c0_i32, %c0_i32_0 : i32, i32
  }
  func.func @transform_3(%arg0: i32) -> (i32, i32) {
    %c0_i32 = arith.constant 0 : i32
    %c0_i32_0 = arith.constant 0 : i32
    %c0_i32_1 = arith.constant 0 : i32
    return %c0_i32, %c0_i32_0 : i32, i32
  }
  func.func @transform_4(%arg0: i32) -> (i32, i32) {
    %c0_i32 = arith.constant 0 : i32
    %c0_i32_0 = arith.constant 0 : i32
    %c0_i32_1 = arith.constant 0 : i32
    return %c0_i32, %c0_i32_0 : i32, i32
  }
  func.func @transform_5(%arg0: i32) -> (i32, i32) {
    %c0_i32 = arith.constant 0 : i32
    %c0_i32_0 = arith.constant 0 : i32
    %c0_i32_1 = arith.constant 0 : i32
    return %c0_i32, %c0_i32_0 : i32, i32
  }
  func.func @transform_6(%arg0: i32) -> (i32, i32) {
    %c0_i32 = arith.constant 0 : i32
    %c0_i32_0 = arith.constant 0 : i32
    %c0_i32_1 = arith.constant 0 : i32
    return %c0_i32, %c0_i32_0 : i32, i32
  }
  func.func @transform_7(%arg0: i32) -> (i32, i32) {
    %c0_i32 = arith.constant 0 : i32
    %c0_i32_0 = arith.constant 0 : i32
    return %arg0, %c0_i32 : i32, i32
  }
}

</mosaic_0001>

<llo_original>
// kernel: discriminator_forward.1
$region0: #{discriminator_forward.1}
  #allocation0 [shape = 'u32[]', space=smem, size = 0x4, offset = 0x4, fixed_abs, tag = 'smem constant byte address 0x4 - core index']
  #allocation1 [shape = 'u32[144,128]{1,0:T(1,128)}', space=vmem, size = 0x12000, scoped, tag = 'internal scratch']
  %s0 = inlined_call_operand.vmem [shape: f32[16,256], index: 0, kind: input, shape index: {}]
  %s1 = inlined_call_operand.vmem [shape: bf16[256,256], index: 1, kind: input, shape index: {}]
  %s2 = inlined_call_operand.vmem [shape: f32[1,256], index: 2, kind: input, shape index: {}]
  %s3 = inlined_call_operand.vmem [shape: bf16[256,256], index: 3, kind: input, shape index: {}]
  %s4 = inlined_call_operand.vmem [shape: f32[1,256], index: 4, kind: input, shape index: {}]
  %s5 = inlined_call_operand.vmem [shape: bf16[256,128], index: 5, kind: input, shape index: {}]
  %s6 = inlined_call_operand.vmem [shape: f32[1,128], index: 6, kind: input, shape index: {}]
  %s7 = inlined_call_operand.vmem [shape: f32[16,128], index: 7, kind: output, shape index: {}]
  %s8 = sld [smem:[#allocation0]]
  $region38: #{discriminator_forward.1} parent=0
    _
  %s10 = ssub.s32 1, %s8
  %s11 = scalar_select 0, %s10, %s8
  // Predicated region
  $region2: #{discriminator_forward.1} parent=0 // pred_check
    _
  $region3: #{discriminator_forward.1} parent=0 // pred_check_branch
    %13 = sbr.rel (0) target = $region5
  $region4: #{discriminator_forward.1} parent=0 // pred_region
    _
  $region5: #{discriminator_forward.1} parent=0 // pred_fallthru
    _
  // Predicated region
  $region6: #{discriminator_forward.1} parent=0 // pred_check
    _
  $region7: #{discriminator_forward.1} parent=0 // pred_check_branch
    %15 = sbr.rel (0) target = $region9
  $region8: #{discriminator_forward.1} parent=0 // pred_region
    _
  $region9: #{discriminator_forward.1} parent=0 // pred_fallthru
    _
  // Predicated region
  $region10: #{discriminator_forward.1} parent=0 // pred_check
    _
  $region11: #{discriminator_forward.1} parent=0 // pred_check_branch
    %17 = sbr.rel (0) target = $region13
  $region12: #{discriminator_forward.1} parent=0 // pred_region
    _
  $region13: #{discriminator_forward.1} parent=0 // pred_fallthru
    _
  // Predicated region
  $region14: #{discriminator_forward.1} parent=0 // pred_check
    _
  $region15: #{discriminator_forward.1} parent=0 // pred_check_branch
    %19 = sbr.rel (0) target = $region17
  $region16: #{discriminator_forward.1} parent=0 // pred_region
    _
  $region17: #{discriminator_forward.1} parent=0 // pred_fallthru
    _
  // Predicated region
  $region18: #{discriminator_forward.1} parent=0 // pred_check
    _
  $region19: #{discriminator_forward.1} parent=0 // pred_check_branch
    %21 = sbr.rel (0) target = $region21
  $region20: #{discriminator_forward.1} parent=0 // pred_region
    _
  $region21: #{discriminator_forward.1} parent=0 // pred_fallthru
    _
  // Predicated region
  $region22: #{discriminator_forward.1} parent=0 // pred_check
    _
  $region23: #{discriminator_forward.1} parent=0 // pred_check_branch
    %23 = sbr.rel (0) target = $region25
  $region24: #{discriminator_forward.1} parent=0 // pred_region
    _
  $region25: #{discriminator_forward.1} parent=0 // pred_fallthru
    _
  // Predicated region
  $region26: #{discriminator_forward.1} parent=0 // pred_check
    _
  $region27: #{discriminator_forward.1} parent=0 // pred_check_branch
    %25 = sbr.rel (0) target = $region29
  $region28: #{discriminator_forward.1} parent=0 // pred_region
    _
  $region29: #{discriminator_forward.1} parent=0 // pred_fallthru
    _
  %v27 = vld [vmem:[%s0] sm:$0xff]
  %v28 = vld [vmem:[%s0 + $0x8] sm:$0xff]
  %v29 = vld [vmem:[%s0 + $0x10] sm:$0xff]
  %v30 = vld [vmem:[%s0 + $0x18] sm:$0xff]
  %v31 = vpack.c.bf16 %v29, %v27
  %v32 = vpack.c.bf16 %v30, %v28
  %v33 = vld [vmem:[%s1] sm:$0xff]
  %v34 = vld [vmem:[%s1 + $0x8] sm:$0xff]
  %v35 = vld [vmem:[%s1 + $0x10] sm:$0xff]
  %v36 = vld [vmem:[%s1 + $0x18] sm:$0xff]
  %v37 = vld [vmem:[%s1 + $0x20] sm:$0xff]
  %v38 = vld [vmem:[%s1 + $0x28] sm:$0xff]
  %v39 = vld [vmem:[%s1 + $0x30] sm:$0xff]
  %v40 = vld [vmem:[%s1 + $0x38] sm:$0xff]
  %v41 = vld [vmem:[%s1 + $0x40] sm:$0xff]
  %v42 = vld [vmem:[%s1 + $0x48] sm:$0xff]
  %v43 = vld [vmem:[%s1 + $0x50] sm:$0xff]
  %v44 = vld [vmem:[%s1 + $0x58] sm:$0xff]
  %v45 = vld [vmem:[%s1 + $0x60] sm:$0xff]
  %v46 = vld [vmem:[%s1 + $0x68] sm:$0xff]
  %v47 = vld [vmem:[%s1 + $0x70] sm:$0xff]
  %v48 = vld [vmem:[%s1 + $0x78] sm:$0xff]
  %v49 = vld [vmem:[%s1 + $0x80] sm:$0xff]
  %v50 = vld [vmem:[%s1 + $0x88] sm:$0xff]
  %v51 = vld [vmem:[%s1 + $0x90] sm:$0xff]
  %v52 = vld [vmem:[%s1 + $0x98] sm:$0xff]
  %v53 = vld [vmem:[%s1 + $0xa0] sm:$0xff]
  %v54 = vld [vmem:[%s1 + $0xa8] sm:$0xff]
  %v55 = vld [vmem:[%s1 + $0xb0] sm:$0xff]
  %v56 = vld [vmem:[%s1 + $0xb8] sm:$0xff]
  %v57 = vld [vmem:[%s1 + $0xc0] sm:$0xff]
  %v58 = vld [vmem:[%s1 + $0xc8] sm:$0xff]
  %v59 = vld [vmem:[%s1 + $0xd0] sm:$0xff]
  %v60 = vld [vmem:[%s1 + $0xd8] sm:$0xff]
  %v61 = vld [vmem:[%s1 + $0xe0] sm:$0xff]
  %v62 = vld [vmem:[%s1 + $0xe8] sm:$0xff]
  %v63 = vld [vmem:[%s1 + $0xf0] sm:$0xff]
  %v64 = vld [vmem:[%s1 + $0xf8] sm:$0xff]
  %v65 = vld [vmem:[%s2] sm:$0x3]
  %v67 = vlaneseq
  %v68 = vshrl.u32 %v67, 7
  %v69 = vsub.s32 0, %v68
  %v70 = vrot.slane %v65, %v69
  %v71 = vlaneseq
  %v72 = vshrl.u32 %v71, 7
  %v73 = vsub.s32 1, %v72
  %v74 = vrot.slane %v65, %v73
  %v109 = vunpack.c.l.b16 %v33
  %v110 = vunpack.c.h.b16 %v33
  %v111 = vunpack.c.l.b16 %v34
  %v112 = vunpack.c.h.b16 %v34
  %v113 = vunpack.c.l.b16 %v35
  %v114 = vunpack.c.h.b16 %v35
  %v115 = vunpack.c.l.b16 %v36
  %v116 = vunpack.c.h.b16 %v36
  %v117 = vunpack.c.l.b16 %v37
  %v118 = vunpack.c.h.b16 %v37
  %v119 = vunpack.c.l.b16 %v38
  %v120 = vunpack.c.h.b16 %v38
  %v121 = vunpack.c.l.b16 %v39
  %v122 = vunpack.c.h.b16 %v39
  %v123 = vunpack.c.l.b16 %v40
  %v124 = vunpack.c.h.b16 %v40
  %v125 = vunpack.c.l.b16 %v41
  %v126 = vunpack.c.h.b16 %v41
  %v127 = vunpack.c.l.b16 %v42
  %v128 = vunpack.c.h.b16 %v42
  %v129 = vunpack.c.l.b16 %v43
  %v130 = vunpack.c.h.b16 %v43
  %v131 = vunpack.c.l.b16 %v44
  %v132 = vunpack.c.h.b16 %v44
  %v133 = vunpack.c.l.b16 %v45
  %v134 = vunpack.c.h.b16 %v45
  %v135 = vunpack.c.l.b16 %v46
  %v136 = vunpack.c.h.b16 %v46
  %v137 = vunpack.c.l.b16 %v47
  %v138 = vunpack.c.h.b16 %v47
  %v139 = vunpack.c.l.b16 %v48
  %v140 = vunpack.c.h.b16 %v48
  %v141 = vunpack.c.l.b16 %v49
  %v142 = vunpack.c.h.b16 %v49
  %v143 = vunpack.c.l.b16 %v50
  %v144 = vunpack.c.h.b16 %v50
  %v145 = vunpack.c.l.b16 %v51
  %v146 = vunpack.c.h.b16 %v51
  %v147 = vunpack.c.l.b16 %v52
  %v148 = vunpack.c.h.b16 %v52
  %v149 = vunpack.c.l.b16 %v53
  %v150 = vunpack.c.h.b16 %v53
  %v151 = vunpack.c.l.b16 %v54
  %v152 = vunpack.c.h.b16 %v54
  %v153 = vunpack.c.l.b16 %v55
  %v154 = vunpack.c.h.b16 %v55
  %v155 = vunpack.c.l.b16 %v56
  %v156 = vunpack.c.h.b16 %v56
  %v157 = vunpack.c.l.b16 %v57
  %v158 = vunpack.c.h.b16 %v57
  %v159 = vunpack.c.l.b16 %v58
  %v160 = vunpack.c.h.b16 %v58
  %v161 = vunpack.c.l.b16 %v59
  %v162 = vunpack.c.h.b16 %v59
  %v163 = vunpack.c.l.b16 %v60
  %v164 = vunpack.c.h.b16 %v60
  %v165 = vunpack.c.l.b16 %v61
  %v166 = vunpack.c.h.b16 %v61
  %v167 = vunpack.c.l.b16 %v62
  %v168 = vunpack.c.h.b16 %v62
  %v169 = vunpack.c.l.b16 %v63
  %v170 = vunpack.c.h.b16 %v63
  %v171 = vunpack.c.l.b16 %v64
  %v172 = vunpack.c.h.b16 %v64
  %v173 = vpack.c.b16 %v111, %v109
  %v174 = vpack.c.b16 %v112, %v110
  %v175 = vpack.c.b16 %v115, %v113
  %v176 = vpack.c.b16 %v116, %v114
  %v177 = vpack.c.b16 %v119, %v117
  %v178 = vpack.c.b16 %v120, %v118
  %v179 = vpack.c.b16 %v123, %v121
  %v180 = vpack.c.b16 %v124, %v122
  %v181 = vpack.c.b16 %v127, %v125
  %v182 = vpack.c.b16 %v128, %v126
  %v183 = vpack.c.b16 %v131, %v129
  %v184 = vpack.c.b16 %v132, %v130
  %v185 = vpack.c.b16 %v135, %v133
  %v186 = vpack.c.b16 %v136, %v134
  %v187 = vpack.c.b16 %v139, %v137
  %v188 = vpack.c.b16 %v140, %v138
  %v189 = vpack.c.b16 %v143, %v141
  %v190 = vpack.c.b16 %v144, %v142
  %v191 = vpack.c.b16 %v147, %v145
  %v192 = vpack.c.b16 %v148, %v146
  %v193 = vpack.c.b16 %v151, %v149
  %v194 = vpack.c.b16 %v152, %v150
  %v195 = vpack.c.b16 %v155, %v153
  %v196 = vpack.c.b16 %v156, %v154
  %v197 = vpack.c.b16 %v159, %v157
  %v198 = vpack.c.b16 %v160, %v158
  %v199 = vpack.c.b16 %v163, %v161
  %v200 = vpack.c.b16 %v164, %v162
  %v201 = vpack.c.b16 %v167, %v165
  %v202 = vpack.c.b16 %v168, %v166
  %v203 = vpack.c.b16 %v171, %v169
  %v204 = vpack.c.b16 %v172, %v170
  %237 = vmatprep.subr.bf16.mxu0 %v174
  %238 = vmatpush1.bf16.msra.mxu0 %v173
  %239 = vmatprep.subr.bf16.mxu0 %v176
  %240 = vmatpush1.bf16.msra.mxu0 %v175
  %241 = vmatprep.subr.bf16.mxu0 %v178
  %242 = vmatpush1.bf16.msra.mxu0 %v177
  %243 = vmatprep.subr.bf16.mxu0 %v180
  %244 = vmatpush1.bf16.msra.mxu0 %v179
  %245 = vmatprep.subr.bf16.mxu0 %v182
  %246 = vmatpush1.bf16.msra.mxu0 %v181
  %247 = vmatprep.subr.bf16.mxu0 %v184
  %248 = vmatpush1.bf16.msra.mxu0 %v183
  %249 = vmatprep.subr.bf16.mxu0 %v186
  %250 = vmatpush1.bf16.msra.mxu0 %v185
  %251 = vmatprep.subr.bf16.mxu0 %v188
  %252 = vmatpush1.bf16.msra.mxu0 %v187
  %253 = vmatprep.subr.bf16.mxu0 %v190
  %254 = vmatpush1.bf16.msra.mxu0 %v189
  %255 = vmatprep.subr.bf16.mxu0 %v192
  %256 = vmatpush1.bf16.msra.mxu0 %v191
  %257 = vmatprep.subr.bf16.mxu0 %v194
  %258 = vmatpush1.bf16.msra.mxu0 %v193
  %259 = vmatprep.subr.bf16.mxu0 %v196
  %260 = vmatpush1.bf16.msra.mxu0 %v195
  %261 = vmatprep.subr.bf16.mxu0 %v198
  %262 = vmatpush1.bf16.msra.mxu0 %v197
  %263 = vmatprep.subr.bf16.mxu0 %v200
  %264 = vmatpush1.bf16.msra.mxu0 %v199
  %265 = vmatprep.subr.bf16.mxu0 %v202
  %266 = vmatpush1.bf16.msra.mxu0 %v201
  %267 = vmatprep.subr.bf16.mxu0 %v204
  %268 = vmatpush1.bf16.msra.mxu0 %v203
  %269 = vmatprep.mubr.bf16.mxu0 %v32
  %270 = vmatmul.mubr.bf16.gmra.mrb[0].mxu0 %v31
  %v271 = vpop.f32.mrb[0].mxu0
  %v272 = vadd.f32 %v70, %v271
  %v273 = vpop.f32.mrb[0].mxu0
  %v274 = vadd.f32 %v74, %v273
  %v275 = vpop.f32.mrb[0].mxu0
  %v276 = vadd.f32 %v70, %v275
  %v277 = vpop.f32.mrb[0].mxu0
  %v278 = vadd.f32 %v74, %v277
  %279 = vdwg.mxu0
  %v280 = vmul.f32 %v272, 0.02
  %v281 = vmul.f32 %v274, 0.02
  %v282 = vmul.f32 %v276, 0.02
  %v283 = vmul.f32 %v278, 0.02
  %v284 = vmax.f32 %v272, %v280
  %v285 = vmax.f32 %v274, %v281
  %v286 = vmax.f32 %v276, %v282
  %v287 = vmax.f32 %v278, %v283
  %v288 = vpack.c.bf16 %v286, %v284
  %v289 = vpack.c.bf16 %v287, %v285
  %v290 = vld [vmem:[%s3] sm:$0xff]
  %v291 = vld [vmem:[%s3 + $0x8] sm:$0xff]
  %v292 = vld [vmem:[%s3 + $0x10] sm:$0xff]
  %v293 = vld [vmem:[%s3 + $0x18] sm:$0xff]
  %v294 = vld [vmem:[%s3 + $0x20] sm:$0xff]
  %v295 = vld [vmem:[%s3 + $0x28] sm:$0xff]
  %v296 = vld [vmem:[%s3 + $0x30] sm:$0xff]
  %v297 = vld [vmem:[%s3 + $0x38] sm:$0xff]
  %v298 = vld [vmem:[%s3 + $0x40] sm:$0xff]
  %v299 = vld [vmem:[%s3 + $0x48] sm:$0xff]
  %v300 = vld [vmem:[%s3 + $0x50] sm:$0xff]
  %v301 = vld [vmem:[%s3 + $0x58] sm:$0xff]
  %v302 = vld [vmem:[%s3 + $0x60] sm:$0xff]
  %v303 = vld [vmem:[%s3 + $0x68] sm:$0xff]
  %v304 = vld [vmem:[%s3 + $0x70] sm:$0xff]
  %v305 = vld [vmem:[%s3 + $0x78] sm:$0xff]
  %v306 = vld [vmem:[%s3 + $0x80] sm:$0xff]
  %v307 = vld [vmem:[%s3 + $0x88] sm:$0xff]
  %v308 = vld [vmem:[%s3 + $0x90] sm:$0xff]
  %v309 = vld [vmem:[%s3 + $0x98] sm:$0xff]
  %v310 = vld [vmem:[%s3 + $0xa0] sm:$0xff]
  %v311 = vld [vmem:[%s3 + $0xa8] sm:$0xff]
  %v312 = vld [vmem:[%s3 + $0xb0] sm:$0xff]
  %v313 = vld [vmem:[%s3 + $0xb8] sm:$0xff]
  %v314 = vld [vmem:[%s3 + $0xc0] sm:$0xff]
  %v315 = vld [vmem:[%s3 + $0xc8] sm:$0xff]
  %v316 = vld [vmem:[%s3 + $0xd0] sm:$0xff]
  %v317 = vld [vmem:[%s3 + $0xd8] sm:$0xff]
  %v318 = vld [vmem:[%s3 + $0xe0] sm:$0xff]
  %v319 = vld [vmem:[%s3 + $0xe8] sm:$0xff]
  %v320 = vld [vmem:[%s3 + $0xf0] sm:$0xff]
  %v321 = vld [vmem:[%s3 + $0xf8] sm:$0xff]
  %v322 = vld [vmem:[%s4] sm:$0x3]
  %v324 = vlaneseq
  %v325 = vshrl.u32 %v324, 7
  %v326 = vsub.s32 0, %v325
  %v327 = vrot.slane %v322, %v326
  %v328 = vlaneseq
  %v329 = vshrl.u32 %v328, 7
  %v330 = vsub.s32 1, %v329
  %v331 = vrot.slane %v322, %v330
  %v366 = vunpack.c.l.b16 %v290
  %v367 = vunpack.c.h.b16 %v290
  %v368 = vunpack.c.l.b16 %v291
  %v369 = vunpack.c.h.b16 %v291
  %v370 = vunpack.c.l.b16 %v292
  %v371 = vunpack.c.h.b16 %v292
  %v372 = vunpack.c.l.b16 %v293
  %v373 = vunpack.c.h.b16 %v293
  %v374 = vunpack.c.l.b16 %v294
  %v375 = vunpack.c.h.b16 %v294
  %v376 = vunpack.c.l.b16 %v295
  %v377 = vunpack.c.h.b16 %v295
  %v378 = vunpack.c.l.b16 %v296
  %v379 = vunpack.c.h.b16 %v296
  %v380 = vunpack.c.l.b16 %v297
  %v381 = vunpack.c.h.b16 %v297
  %v382 = vunpack.c.l.b16 %v298
  %v383 = vunpack.c.h.b16 %v298
  %v384 = vunpack.c.l.b16 %v299
  %v385 = vunpack.c.h.b16 %v299
  %v386 = vunpack.c.l.b16 %v300
  %v387 = vunpack.c.h.b16 %v300
  %v388 = vunpack.c.l.b16 %v301
  %v389 = vunpack.c.h.b16 %v301
  %v390 = vunpack.c.l.b16 %v302
  %v391 = vunpack.c.h.b16 %v302
  %v392 = vunpack.c.l.b16 %v303
  %v393 = vunpack.c.h.b16 %v303
  %v394 = vunpack.c.l.b16 %v304
  %v395 = vunpack.c.h.b16 %v304
  %v396 = vunpack.c.l.b16 %v305
  %v397 = vunpack.c.h.b16 %v305
  %v398 = vunpack.c.l.b16 %v306
  %v399 = vunpack.c.h.b16 %v306
  %v400 = vunpack.c.l.b16 %v307
  %v401 = vunpack.c.h.b16 %v307
  %v402 = vunpack.c.l.b16 %v308
  %v403 = vunpack.c.h.b16 %v308
  %v404 = vunpack.c.l.b16 %v309
  %v405 = vunpack.c.h.b16 %v309
  %v406 = vunpack.c.l.b16 %v310
  %v407 = vunpack.c.h.b16 %v310
  %v408 = vunpack.c.l.b16 %v311
  %v409 = vunpack.c.h.b16 %v311
  %v410 = vunpack.c.l.b16 %v312
  %v411 = vunpack.c.h.b16 %v312
  %v412 = vunpack.c.l.b16 %v313
  %v413 = vunpack.c.h.b16 %v313
  %v414 = vunpack.c.l.b16 %v314
  %v415 = vunpack.c.h.b16 %v314
  %v416 = vunpack.c.l.b16 %v315
  %v417 = vunpack.c.h.b16 %v315
  %v418 = vunpack.c.l.b16 %v316
  %v419 = vunpack.c.h.b16 %v316
  %v420 = vunpack.c.l.b16 %v317
  %v421 = vunpack.c.h.b16 %v317
  %v422 = vunpack.c.l.b16 %v318
  %v423 = vunpack.c.h.b16 %v318
  %v424 = vunpack.c.l.b16 %v319
  %v425 = vunpack.c.h.b16 %v319
  %v426 = vunpack.c.l.b16 %v320
  %v427 = vunpack.c.h.b16 %v320
  %v428 = vunpack.c.l.b16 %v321
  %v429 = vunpack.c.h.b16 %v321
  %v430 = vpack.c.b16 %v368, %v366
  %v431 = vpack.c.b16 %v369, %v367
  %v432 = vpack.c.b16 %v372, %v370
  %v433 = vpack.c.b16 %v373, %v371
  %v434 = vpack.c.b16 %v376, %v374
  %v435 = vpack.c.b16 %v377, %v375
  %v436 = vpack.c.b16 %v380, %v378
  %v437 = vpack.c.b16 %v381, %v379
  %v438 = vpack.c.b16 %v384, %v382
  %v439 = vpack.c.b16 %v385, %v383
  %v440 = vpack.c.b16 %v388, %v386
  %v441 = vpack.c.b16 %v389, %v387
  %v442 = vpack.c.b16 %v392, %v390
  %v443 = vpack.c.b16 %v393, %v391
  %v444 = vpack.c.b16 %v396, %v394
  %v445 = vpack.c.b16 %v397, %v395
  %v446 = vpack.c.b16 %v400, %v398
  %v447 = vpack.c.b16 %v401, %v399
  %v448 = vpack.c.b16 %v404, %v402
  %v449 = vpack.c.b16 %v405, %v403
  %v450 = vpack.c.b16 %v408, %v406
  %v451 = vpack.c.b16 %v409, %v407
  %v452 = vpack.c.b16 %v412, %v410
  %v453 = vpack.c.b16 %v413, %v411
  %v454 = vpack.c.b16 %v416, %v414
  %v455 = vpack.c.b16 %v417, %v415
  %v456 = vpack.c.b16 %v420, %v418
  %v457 = vpack.c.b16 %v421, %v419
  %v458 = vpack.c.b16 %v424, %v422
  %v459 = vpack.c.b16 %v425, %v423
  %v460 = vpack.c.b16 %v428, %v426
  %v461 = vpack.c.b16 %v429, %v427
  %494 = vmatprep.subr.bf16.mxu0 %v431
  %495 = vmatpush1.bf16.msra.mxu0 %v430
  %496 = vmatprep.subr.bf16.mxu0 %v433
  %497 = vmatpush1.bf16.msra.mxu0 %v432
  %498 = vmatprep.subr.bf16.mxu0 %v435
  %499 = vmatpush1.bf16.msra.mxu0 %v434
  %500 = vmatprep.subr.bf16.mxu0 %v437
  %501 = vmatpush1.bf16.msra.mxu0 %v436
  %502 = vmatprep.subr.bf16.mxu0 %v439
  %503 = vmatpush1.bf16.msra.mxu0 %v438
  %504 = vmatprep.subr.bf16.mxu0 %v441
  %505 = vmatpush1.bf16.msra.mxu0 %v440
  %506 = vmatprep.subr.bf16.mxu0 %v443
  %507 = vmatpush1.bf16.msra.mxu0 %v442
  %508 = vmatprep.subr.bf16.mxu0 %v445
  %509 = vmatpush1.bf16.msra.mxu0 %v444
  %510 = vmatprep.subr.bf16.mxu0 %v447
  %511 = vmatpush1.bf16.msra.mxu0 %v446
  %512 = vmatprep.subr.bf16.mxu0 %v449
  %513 = vmatpush1.bf16.msra.mxu0 %v448
  %514 = vmatprep.subr.bf16.mxu0 %v451
  %515 = vmatpush1.bf16.msra.mxu0 %v450
  %516 = vmatprep.subr.bf16.mxu0 %v453
  %517 = vmatpush1.bf16.msra.mxu0 %v452
  %518 = vmatprep.subr.bf16.mxu0 %v455
  %519 = vmatpush1.bf16.msra.mxu0 %v454
  %520 = vmatprep.subr.bf16.mxu0 %v457
  %521 = vmatpush1.bf16.msra.mxu0 %v456
  %522 = vmatprep.subr.bf16.mxu0 %v459
  %523 = vmatpush1.bf16.msra.mxu0 %v458
  %524 = vmatprep.subr.bf16.mxu0 %v461
  %525 = vmatpush1.bf16.msra.mxu0 %v460
  %526 = vmatprep.mubr.bf16.mxu0 %v289
  %527 = vmatmul.mubr.bf16.gmra.mrb[0].mxu0 %v288
  %v528 = vpop.f32.mrb[0].mxu0
  %v529 = vadd.f32 %v327, %v528
  %v530 = vpop.f32.mrb[0].mxu0
  %v531 = vadd.f32 %v331, %v530
  %v532 = vpop.f32.mrb[0].mxu0
  %v533 = vadd.f32 %v327, %v532
  %v534 = vpop.f32.mrb[0].mxu0
  %v535 = vadd.f32 %v331, %v534
  %536 = vdwg.mxu0
  %v537 = vmul.f32 %v529, 0.02
  %v538 = vmul.f32 %v531, 0.02
  %v539 = vmul.f32 %v533, 0.02
  %v540 = vmul.f32 %v535, 0.02
  %v541 = vmax.f32 %v529, %v537
  %v542 = vmax.f32 %v531, %v538
  %v543 = vmax.f32 %v533, %v539
  %v544 = vmax.f32 %v535, %v540
  %v545 = vpack.c.bf16 %v543, %v541
  %v546 = vpack.c.bf16 %v544, %v542
  %v547 = vld [vmem:[%s5] sm:$0xf]
  %v548 = vld [vmem:[%s5 + $0x4] sm:$0xf]
  %v549 = vld [vmem:[%s5 + $0x8] sm:$0xf]
  %v550 = vld [vmem:[%s5 + $0xc] sm:$0xf]
  %v551 = vld [vmem:[%s5 + $0x10] sm:$0xf]
  %v552 = vld [vmem:[%s5 + $0x14] sm:$0xf]
  %v553 = vld [vmem:[%s5 + $0x18] sm:$0xf]
  %v554 = vld [vmem:[%s5 + $0x1c] sm:$0xf]
  %v555 = vld [vmem:[%s5 + $0x20] sm:$0xf]
  %v556 = vld [vmem:[%s5 + $0x24] sm:$0xf]
  %v557 = vld [vmem:[%s5 + $0x28] sm:$0xf]
  %v558 = vld [vmem:[%s5 + $0x2c] sm:$0xf]
  %v559 = vld [vmem:[%s5 + $0x30] sm:$0xf]
  %v560 = vld [vmem:[%s5 + $0x34] sm:$0xf]
  %v561 = vld [vmem:[%s5 + $0x38] sm:$0xf]
  %v562 = vld [vmem:[%s5 + $0x3c] sm:$0xf]
  %v563 = vld [vmem:[%s5 + $0x40] sm:$0xf]
  %v564 = vld [vmem:[%s5 + $0x44] sm:$0xf]
  %v565 = vld [vmem:[%s5 + $0x48] sm:$0xf]
  %v566 = vld [vmem:[%s5 + $0x4c] sm:$0xf]
  %v567 = vld [vmem:[%s5 + $0x50] sm:$0xf]
  %v568 = vld [vmem:[%s5 + $0x54] sm:$0xf]
  %v569 = vld [vmem:[%s5 + $0x58] sm:$0xf]
  %v570 = vld [vmem:[%s5 + $0x5c] sm:$0xf]
  %v571 = vld [vmem:[%s5 + $0x60] sm:$0xf]
  %v572 = vld [vmem:[%s5 + $0x64] sm:$0xf]
  %v573 = vld [vmem:[%s5 + $0x68] sm:$0xf]
  %v574 = vld [vmem:[%s5 + $0x6c] sm:$0xf]
  %v575 = vld [vmem:[%s5 + $0x70] sm:$0xf]
  %v576 = vld [vmem:[%s5 + $0x74] sm:$0xf]
  %v577 = vld [vmem:[%s5 + $0x78] sm:$0xf]
  %v578 = vld [vmem:[%s5 + $0x7c] sm:$0xf]
  %v579 = vld [vmem:[%s6] sm:$0x1]
  %v581 = vlaneseq
  %v582 = vshrl.u32 %v581, 7
  %v583 = vsub.s32 0, %v582
  %v584 = vrot.slane %v579, %v583
  %v618 = vunpack.c.l.b16 %v547
  %v619 = vunpack.c.l.b16 %v548
  %v620 = vunpack.c.l.b16 %v549
  %v621 = vunpack.c.l.b16 %v550
  %v622 = vunpack.c.l.b16 %v551
  %v623 = vunpack.c.l.b16 %v552
  %v624 = vunpack.c.l.b16 %v553
  %v625 = vunpack.c.l.b16 %v554
  %v626 = vunpack.c.l.b16 %v555
  %v627 = vunpack.c.l.b16 %v556
  %v628 = vunpack.c.l.b16 %v557
  %v629 = vunpack.c.l.b16 %v558
  %v630 = vunpack.c.l.b16 %v559
  %v631 = vunpack.c.l.b16 %v560
  %v632 = vunpack.c.l.b16 %v561
  %v633 = vunpack.c.l.b16 %v562
  %v634 = vunpack.c.l.b16 %v563
  %v635 = vunpack.c.l.b16 %v564
  %v636 = vunpack.c.l.b16 %v565
  %v637 = vunpack.c.l.b16 %v566
  %v638 = vunpack.c.l.b16 %v567
  %v639 = vunpack.c.l.b16 %v568
  %v640 = vunpack.c.l.b16 %v569
  %v641 = vunpack.c.l.b16 %v570
  %v642 = vunpack.c.l.b16 %v571
  %v643 = vunpack.c.l.b16 %v572
  %v644 = vunpack.c.l.b16 %v573
  %v645 = vunpack.c.l.b16 %v574
  %v646 = vunpack.c.l.b16 %v575
  %v647 = vunpack.c.l.b16 %v576
  %v648 = vunpack.c.l.b16 %v577
  %v649 = vunpack.c.l.b16 %v578
  %v650 = vpack.c.b16 %v619, %v618
  %v651 = vpack.c.b16 %v621, %v620
  %v652 = vpack.c.b16 %v623, %v622
  %v653 = vpack.c.b16 %v625, %v624
  %v654 = vpack.c.b16 %v627, %v626
  %v655 = vpack.c.b16 %v629, %v628
  %v656 = vpack.c.b16 %v631, %v630
  %v657 = vpack.c.b16 %v633, %v632
  %v658 = vpack.c.b16 %v635, %v634
  %v659 = vpack.c.b16 %v637, %v636
  %v660 = vpack.c.b16 %v639, %v638
  %v661 = vpack.c.b16 %v641, %v640
  %v662 = vpack.c.b16 %v643, %v642
  %v663 = vpack.c.b16 %v645, %v644
  %v664 = vpack.c.b16 %v647, %v646
  %v665 = vpack.c.b16 %v649, %v648
  %682 = vmatprep.subr.bf16.mxu0 0
  %683 = vmatpush1.bf16.msra.mxu0 %v650
  %684 = vmatprep.subr.bf16.mxu0 0
  %685 = vmatpush1.bf16.msra.mxu0 %v651
  %686 = vmatprep.subr.bf16.mxu0 0
  %687 = vmatpush1.bf16.msra.mxu0 %v652
  %688 = vmatprep.subr.bf16.mxu0 0
  %689 = vmatpush1.bf16.msra.mxu0 %v653
  %690 = vmatprep.subr.bf16.mxu0 0
  %691 = vmatpush1.bf16.msra.mxu0 %v654
  %692 = vmatprep.subr.bf16.mxu0 0
  %693 = vmatpush1.bf16.msra.mxu0 %v655
  %694 = vmatprep.subr.bf16.mxu0 0
  %695 = vmatpush1.bf16.msra.mxu0 %v656
  %696 = vmatprep.subr.bf16.mxu0 0
  %697 = vmatpush1.bf16.msra.mxu0 %v657
  %698 = vmatprep.subr.bf16.mxu0 0
  %699 = vmatpush1.bf16.msra.mxu0 %v658
  %700 = vmatprep.subr.bf16.mxu0 0
  %701 = vmatpush1.bf16.msra.mxu0 %v659
  %702 = vmatprep.subr.bf16.mxu0 0
  %703 = vmatpush1.bf16.msra.mxu0 %v660
  %704 = vmatprep.subr.bf16.mxu0 0
  %705 = vmatpush1.bf16.msra.mxu0 %v661
  %706 = vmatprep.subr.bf16.mxu0 0
  %707 = vmatpush1.bf16.msra.mxu0 %v662
  %708 = vmatprep.subr.bf16.mxu0 0
  %709 = vmatpush1.bf16.msra.mxu0 %v663
  %710 = vmatprep.subr.bf16.mxu0 0
  %711 = vmatpush1.bf16.msra.mxu0 %v664
  %712 = vmatprep.subr.bf16.mxu0 0
  %713 = vmatpush1.bf16.msra.mxu0 %v665
  %714 = vmatprep.mubr.bf16.mxu0 %v546
  %715 = vmatmul.mubr.bf16.gmra.mrb[0].mxu0 %v545
  %v716 = vpop.f32.mrb[0].mxu0
  %v717 = vadd.f32 %v584, %v716
  %v718 = vpop.f32.mrb[0].mxu0
  %v719 = vpop.f32.mrb[0].mxu0
  %v720 = vadd.f32 %v584, %v719
  %v721 = vpop.f32.mrb[0].mxu0
  %722 = vdwg.mxu0
  %723 = vst [vmem:[%s7] sm:$0xff] %v717
  %724 = vst [vmem:[%s7 + $0x8] sm:$0xff] %v720
  // Predicated region
  $region30: #{discriminator_forward.1} parent=0 // pred_check
    _
  $region31: #{discriminator_forward.1} parent=0 // pred_check_branch
    %726 = sbr.rel (0) target = $region33
  $region32: #{discriminator_forward.1} parent=0 // pred_region
    _
  $region33: #{discriminator_forward.1} parent=0 // pred_fallthru
    _
  // Predicated region
  $region34: #{discriminator_forward.1} parent=0 // pred_check
    _
  $region35: #{discriminator_forward.1} parent=0 // pred_check_branch
    %728 = sbr.rel (0) target = $region37
  $region36: #{discriminator_forward.1} parent=0 // pred_region
    _
  $region37: #{discriminator_forward.1} parent=0 // pred_fallthru
    _

</llo_original>
